<compile_context>
chip_gen: v6e
topology: v6e:2x2x1
jax: 0.10.0
libtpu: 0.0.40
codegen_flags: <defaults>
</compile_context>

<pallas_src>
import jax
import jax.numpy as jnp
from jax.experimental import pallas as pl
from jax.experimental.pallas import tpu as pltpu


def _round_up(v, m):
    return ((v + m - 1) // m) * m


def _classifier_kernel(x_ref, w_ref, b_ref, o_ref, acc_ref):
    # x_ref: [tile_b, tile_k]   w_ref: [tile_k, NC_pad]   b_ref: [1, NC_pad] (f32)
    # o_ref: [tile_b, NC_pad]   acc_ref: [tile_b, NC_pad] f32 scratch
    k = pl.program_id(1)

    @pl.when(k == 0)
    def _init():
        acc_ref[...] = jnp.zeros_like(acc_ref)

    acc_ref[...] += jnp.dot(x_ref[...], w_ref[...],
                            preferred_element_type=jnp.float32)

    @pl.when(k == pl.num_programs(1) - 1)
    def _finalize():
        # TODO(synk): Dropout(p=0.2) is identity at inference and is not applied.
        o_ref[...] = (acc_ref[...] + b_ref[...]).astype(o_ref.dtype)


def intermediate_classifier(x, weight, bias, *, tile_b=256, tile_k=2048):
    """x: [B, C, H, W] (NCHW), weight: [num_classes, C] (PyTorch Linear layout),
    bias: [num_classes]. Returns [B, num_classes] logits."""
    B, C, H, W = x.shape
    num_classes = weight.shape[0]
    hw = H * W

    kernel_size = 3584 // C
    assert H == kernel_size and W == kernel_size, (
        "AvgPool2d kernel must cover the full spatial extent "
        f"(expected spatial {kernel_size}x{kernel_size}, got {H}x{W})")

    K = C * hw
    nc_pad = _round_up(num_classes, 128)      # lane-dense output / MXU N dim

    # Aligned tile sizes (sublane multiple of 8, lane multiple of 128), clamped
    # so tiny test shapes still work.
    tile_b = max(8, min(_round_up(tile_b, 8), _round_up(B, 8)))
    tile_k = max(128, min(_round_up(tile_k, 128), _round_up(K, 128)))
    b_pad = _round_up(B, tile_b)
    k_pad = _round_up(K, tile_k)

    # Activations: flatten spatial into the reduction axis (C-major, HW-minor).
    x_flat = x.reshape(B, K)
    x_flat = jnp.pad(x_flat, ((0, b_pad - B), (0, k_pad - K)))

    # Fold the 1/HW pooling scale into the classifier weights (scale in f32 before
    # any dtype cast), then expand to [K, NC_pad] so the pool becomes part of the matmul.
    w_t = weight.astype(jnp.float32).T / jnp.float32(hw)        # [C, NC]
    w_big = jnp.repeat(w_t, hw, axis=0)                         # [K, NC]
    w_big = jnp.pad(w_big, ((0, k_pad - K), (0, nc_pad - num_classes)))
    w_big = w_big.astype(x.dtype)

    b2d = jnp.pad(bias.astype(jnp.float32), (0, nc_pad - num_classes))
    b2d = b2d.reshape(1, nc_pad)

    grid = (b_pad // tile_b, k_pad // tile_k)

    out = pl.pallas_call(
        _classifier_kernel,
        out_shape=jax.ShapeDtypeStruct((b_pad, nc_pad), x.dtype),
        grid_spec=pltpu.PrefetchScalarGridSpec(
            num_scalar_prefetch=0,
            grid=grid,
            in_specs=[
                pl.BlockSpec((tile_b, tile_k), lambda i, k: (i, k)),
                pl.BlockSpec((tile_k, nc_pad), lambda i, k: (k, 0)),
                pl.BlockSpec((1, nc_pad), lambda i, k: (0, 0)),
            ],
            out_specs=pl.BlockSpec((tile_b, nc_pad), lambda i, k: (i, 0)),
            scratch_shapes=[pltpu.VMEM((tile_b, nc_pad), jnp.float32)],
        ),
        compiler_params=pltpu.CompilerParams(
            dimension_semantics=("parallel", "arbitrary"),
            vmem_limit_bytes=32 * 1024 * 1024,
        ),
    )(x_flat, w_big, b2d)

    return out[:B, :num_classes]


if __name__ == "__main__":
    # num_channels=448 -> kernel_size = 3584 / 448 = 8, so spatial must be 8x8
    # for the module's AvgPool + flatten + Linear(C, NC) to be consistent.
    B, C, H, W = 2, 448, 8, 8
    num_classes = 10

    key = jax.random.PRNGKey(0)
    kx, kw, kb = jax.random.split(key, 3)

    x = jax.random.normal(kx, (B, C, H, W), dtype=jnp.float32)

    # PyTorch-style Linear(C, num_classes) init.
    bound = 1.0 / jnp.sqrt(jnp.float32(C))
    weight = jax.random.uniform(kw, (num_classes, C), jnp.float32, -bound, bound)
    bias = jax.random.uniform(kb, (num_classes,), jnp.float32, -bound, bound)

    out = intermediate_classifier(x, weight, bias)
    out = jax.block_until_ready(out)

    # Pure-JAX reference: global average pool + Linear.
    ref = jnp.mean(x, axis=(2, 3)) @ weight.T + bias
    assert out.shape == (B, num_classes)
    assert jnp.allclose(out, ref, atol=2e-3, rtol=2e-3), (
        float(jnp.max(jnp.abs(out - ref))))

    print("KERNEL_OK")
</pallas_src>

<mosaic_0001>
module attributes {stable_mosaic.version = 11 : i64} {
  func.func @_classifier_kernel(%arg0: i32, %arg1: i32, %arg2: memref<8x2048xf32, #tpu.memory_space<vmem>>, %arg3: memref<2048x128xf32, #tpu.memory_space<vmem>>, %arg4: memref<1x128xf32, #tpu.memory_space<vmem>>, %arg5: memref<8x128xf32, #tpu.memory_space<vmem>>, %arg6: memref<8x128xf32, #tpu.memory_space<vmem>>) attributes {dimension_semantics = [#tpu.dimension_semantics<parallel>, #tpu.dimension_semantics<arbitrary>], iteration_bounds = array<i64: 1, 14>, scalar_prefetch = 0 : i64, scratch_operands = 1 : i64, tpu.core_type = #tpu.core_type<tc>, window_params = [{transform_indices = @transform_0, window_bounds = array<i64: 8, 2048>}, {transform_indices = @transform_1, window_bounds = array<i64: 2048, 128>}, {pipeline_mode = #tpu.pipeline_mode<synchronous>, transform_indices = @transform_2, window_bounds = array<i64: 1, 128>}, {transform_indices = @transform_3, window_bounds = array<i64: 8, 128>}]} {
    %c0_i32 = arith.constant 0 : i32
    %0 = arith.cmpi eq, %arg1, %c0_i32 : i32
    %1 = arith.extui %0 : i1 to i32
    %c0_i32_0 = arith.constant 0 : i32
    %2 = arith.cmpi ne, %1, %c0_i32_0 : i32
    scf.if %2 {
      %cst_9 = arith.constant 0.000000e+00 : f32
      %12 = vector.broadcast %cst_9 : f32 to vector<8x128xf32>
      %c0_10 = arith.constant 0 : index
      %c0_11 = arith.constant 0 : index
      %13 = vector.load %arg6[%c0_10, %c0_11] : memref<8x128xf32, #tpu.memory_space<vmem>>, vector<8x128xf32>
      tpu.vector_store %arg6[%c0_10, %c0_11], %12 {strides = array<i32>} : memref<8x128xf32, #tpu.memory_space<vmem>>, vector<8x128xf32>,
    } else {
    }
    %c0 = arith.constant 0 : index
    %c0_1 = arith.constant 0 : index
    %3 = vector.load %arg6[%c0, %c0_1] : memref<8x128xf32, #tpu.memory_space<vmem>>, vector<8x128xf32>
    %c0_2 = arith.constant 0 : index
    %c0_3 = arith.constant 0 : index
    %4 = vector.load %arg2[%c0_2, %c0_3] : memref<8x2048xf32, #tpu.memory_space<vmem>>, vector<8x2048xf32>
    %c0_4 = arith.constant 0 : index
    %c0_5 = arith.constant 0 : index
    %5 = vector.load %arg3[%c0_4, %c0_5] : memref<2048x128xf32, #tpu.memory_space<vmem>>, vector<2048x128xf32>
    %cst = arith.constant dense<0.000000e+00> : vector<8x128xf32>
    %6 = tpu.matmul %4, %5, %cst {dimension_numbers = #tpu.dot_dimension_numbers<[1], [0], [0], [1], [0, 0, 1, 1], [], []>} : vector<8x2048xf32>, vector<2048x128xf32>, vector<8x128xf32> -> vector<8x128xf32>
    %7 = arith.addf %3, %6 : vector<8x128xf32>
    %c0_6 = arith.constant 0 : index
    %c0_7 = arith.constant 0 : index
    %8 = vector.load %arg6[%c0_6, %c0_7] : memref<8x128xf32, #tpu.memory_space<vmem>>, vector<8x128xf32>
    tpu.vector_store %arg6[%c0_6, %c0_7], %7 {strides = array<i32>} : memref<8x128xf32, #tpu.memory_space<vmem>>, vector<8x128xf32>,
    %c13_i32 = arith.constant 13 : i32
    %9 = arith.cmpi eq, %arg1, %c13_i32 : i32
    %10 = arith.extui %9 : i1 to i32
    %c0_i32_8 = arith.constant 0 : i32
    %11 = arith.cmpi ne, %10, %c0_i32_8 : i32
    scf.if %11 {
      %c0_9 = arith.constant 0 : index
      %c0_10 = arith.constant 0 : index
      %12 = vector.load %arg6[%c0_9, %c0_10] : memref<8x128xf32, #tpu.memory_space<vmem>>, vector<8x128xf32>
      %c0_11 = arith.constant 0 : index
      %c0_12 = arith.constant 0 : index
      %13 = vector.load %arg4[%c0_11, %c0_12] : memref<1x128xf32, #tpu.memory_space<vmem>>, vector<1x128xf32>
      %14 = vector.broadcast %13 : vector<1x128xf32> to vector<8x128xf32>
      %15 = arith.addf %12, %14 : vector<8x128xf32>
      %c0_13 = arith.constant 0 : index
      %c0_14 = arith.constant 0 : index
      %16 = vector.load %arg5[%c0_13, %c0_14] : memref<8x128xf32, #tpu.memory_space<vmem>>, vector<8x128xf32>
      tpu.vector_store %arg5[%c0_13, %c0_14], %15 {strides = array<i32>} : memref<8x128xf32, #tpu.memory_space<vmem>>, vector<8x128xf32>,
    } else {
    }
    return
  }
  func.func @transform_0(%arg0: i32, %arg1: i32) -> (i32, i32) {
    %c0_i32 = arith.constant 0 : i32
    return %arg0, %arg1 : i32, i32
  }
  func.func @transform_1(%arg0: i32, %arg1: i32) -> (i32, i32) {
    %c0_i32 = arith.constant 0 : i32
    %c0_i32_0 = arith.constant 0 : i32
    return %arg1, %c0_i32 : i32, i32
  }
  func.func @transform_2(%arg0: i32, %arg1: i32) -> (i32, i32) {
    %c0_i32 = arith.constant 0 : i32
    %c0_i32_0 = arith.constant 0 : i32
    %c0_i32_1 = arith.constant 0 : i32
    return %c0_i32, %c0_i32_0 : i32, i32
  }
  func.func @transform_3(%arg0: i32, %arg1: i32) -> (i32, i32) {
    %c0_i32 = arith.constant 0 : i32
    %c0_i32_0 = arith.constant 0 : i32
    return %arg0, %c0_i32 : i32, i32
  }
}

</mosaic_0001>

<llo_original>
// kernel: tpu_custom_call.1
$region0: #{tpu_custom_call.1}
  #allocation0 [shape = 'u32[]', space=smem, size = 0x4, offset = 0x4, fixed_abs, tag = 'smem constant byte address 0x4 - core index']
  #allocation1 [shape = 'u32[144,128]{1,0:T(1,128)}', space=vmem, size = 0x12000, scoped, tag = 'internal scratch']
  #allocation2 [shape = 'f32[8,128]{1,0:T(8,128)}', space=vmem, size = 0x1000, scoped, tag = 'scratch operand']
  %s0 = inlined_call_operand.hbm [shape: f32[8,28672], index: 0, kind: input, shape index: {}]
  %s1 = inlined_call_operand.hbm [shape: f32[28672,128], index: 1, kind: input, shape index: {}]
  %s2 = inlined_call_operand.hbm [shape: f32[1,128], index: 2, kind: input, shape index: {}]
  %s3 = inlined_call_operand.hbm [shape: f32[8,128], index: 3, kind: output, shape index: {}]
  %s4 = sld [smem:[#allocation0]]
  $region65: #{tpu_custom_call.1} parent=0
    _
  %s6 = ssub.s32 1, %s4
  %s7 = scalar_select 0, %s6, %s4
  $region1: #{tpu_custom_call.1} parent=0
    #allocation3 [shape = 'u8[131072]{0}', space=vmem, size = 0x20000, scoped, tag = 'input window, operand 0']
    #allocation4 [shape = 's32[2]{0}', space=sflag, size = 0x8, scoped, tag = 'scoped memory for tpu_custom_call.1']
    #allocation5 [shape = 's32[2]{0}', space=sflag, size = 0x8, scoped, tag = 'scoped memory for tpu_custom_call.1']
    #allocation6 [shape = 'u8[2097152]{0}', space=vmem, size = 0x200000, scoped, tag = 'input window, operand 1']
    #allocation7 [shape = 's32[2]{0}', space=sflag, size = 0x8, scoped, tag = 'scoped memory for tpu_custom_call.1']
    #allocation8 [shape = 'u8[512]{0}', space=vmem, size = 0x400, scoped, tag = 'input window, operand 2, single buffered']
    #allocation9 [shape = 'u8[4096]{0}', space=vmem, size = 0x1000, scoped, tag = 'output window, operand 0, single buffered']
    %8 = vsyncpa [#allocation4], 0
    %s9 = scalar_lea.sflag [#allocation4], 1
    %10 = vsyncpa %s9, 0
    %11 = vsyncpa [#allocation7], 0
    %s12 = scalar_lea.sflag [#allocation7], 1
    %13 = vsyncpa %s12, 0
    %14 = vsyncpa [#allocation5], 0
    loop: start=0, step=1, limit=16
    $region2: #{tpu_custom_call.1} parent=1 // loop_pre_header
      _
    $region3: #{tpu_custom_call.1} parent=1 // loop_header
      %s16 = sphi 0, %s20
      %p17 = scmp.ge.s32.totalorder %s16, 16
      %s23 = sphi 0, %s35
      %s24 = sphi 0, %s31
      %s25 = sphi 0, %s23
      %s26 = sphi 0, %s24
      %s27 = sphi 0, %s25
      %s28 = sphi 0, %s26
      %s40 = sphi 0, %s42
      %s43 = sphi 0, %s40
      %s44 = sphi 0, %s43
      %s60 = sphi 0, %s44
      %s66 = sphi 0, %s68
      %s69 = sphi 0, %s66
      %s70 = sphi 0, %s69
      %s86 = sphi 0, %s70
      %s90 = sphi 0, %s90
      %s92 = sphi 0, %s90
      %s93 = sphi 0, %s92
      %s107 = sphi 0, %s93
      %s113 = sphi 0, %s115
      %s116 = sphi 0, %s113
      %s117 = sphi 0, %s116
      %s133 = sphi 0, %s117
    $region4: #{tpu_custom_call.1} parent=1 // loop_header_branch
      %19 = sbr.rel (%p17) target = $region8
    $region5: #{tpu_custom_call.1} parent=1 // loop_body
      %s21 = ssub.s32 %s16, 1
      %s22 = ssub.s32 %s16, 2
      %s29 = sadd.s32 1, %s24
      %p30 = scmp.ge.s32.totalorder %s29, 14
      %s31 = scalar_select %p30, 0, %s29
      %s32 = sadd.s32 1, %s23
      %s33 = scalar_select %p30, %s32, %s23
      %p34 = scmp.ge.s32.totalorder %s33, 1
      %s35 = scalar_select %p34, 0, %s33
      %s36 = ssub.s32 %s23, %s35
      %s37 = ssub.s32 %s24, %s31
      %s38 = sor.u32 %s36, %s37
      %p39 = scmp.eq.s32.totalorder %s38, 0
      %s41 = sadd.s32 %s40, 1
      %s42 = scalar_select %p39, %s40, %s41
      %p45 = pneg %p39
      %p46 = scmp.eq.s32.totalorder %s16, 13
      %p47 = por %p45, %p46
      %p48 = scmp.ne.s32.totalorder %s40, %s43
      %p49 = scmp.eq.s32.totalorder %s16, 0
      %p50 = por %p48, %p49
      %p51 = scmp.ne.s32.totalorder %s40, %s43
      %p52 = scmp.eq.s32.totalorder %s21, 13
      %p53 = por %p51, %p52
      %p54 = scmp.ne.s32.totalorder %s43, %s44
      %p55 = scmp.eq.s32.totalorder %s21, 0
      %p56 = por %p54, %p55
      %p57 = scmp.ne.s32.totalorder %s43, %s44
      %p58 = scmp.eq.s32.totalorder %s22, 13
      %p59 = por %p57, %p58
      %p61 = scmp.ne.s32.totalorder %s44, %s60
      %p62 = scmp.eq.s32.totalorder %s22, 0
      %p63 = por %p61, %p62
      %s64 = ssub.s32 %s24, %s31
      %p65 = scmp.eq.s32.totalorder %s64, 0
      %s67 = sadd.s32 %s66, 1
      %s68 = scalar_select %p65, %s66, %s67
      %p71 = pneg %p65
      %p72 = scmp.eq.s32.totalorder %s16, 13
      %p73 = por %p71, %p72
      %p74 = scmp.ne.s32.totalorder %s66, %s69
      %p75 = scmp.eq.s32.totalorder %s16, 0
      %p76 = por %p74, %p75
      %p77 = scmp.ne.s32.totalorder %s66, %s69
      %p78 = scmp.eq.s32.totalorder %s21, 13
      %p79 = por %p77, %p78
      %p80 = scmp.ne.s32.totalorder %s69, %s70
      %p81 = scmp.eq.s32.totalorder %s21, 0
      %p82 = por %p80, %p81
      %p83 = scmp.ne.s32.totalorder %s69, %s70
      %p84 = scmp.eq.s32.totalorder %s22, 13
      %p85 = por %p83, %p84
      %p87 = scmp.ne.s32.totalorder %s70, %s86
      %p88 = scmp.eq.s32.totalorder %s22, 0
      %p89 = por %p87, %p88
      %s91 = sadd.s32 %s90, 1
      %p94 = scmp.eq.s32.totalorder %s16, 13
      %p95 = scmp.ne.s32.totalorder %s90, %s92
      %p96 = scmp.eq.s32.totalorder %s16, 0
      %p97 = por %p95, %p96
      %p98 = scmp.ne.s32.totalorder %s90, %s92
      %p99 = scmp.eq.s32.totalorder %s21, 13
      %p100 = por %p98, %p99
      %p101 = scmp.ne.s32.totalorder %s92, %s93
      %p102 = scmp.eq.s32.totalorder %s21, 0
      %p103 = por %p101, %p102
      %p104 = scmp.ne.s32.totalorder %s92, %s93
      %p105 = scmp.eq.s32.totalorder %s22, 13
      %p106 = por %p104, %p105
      %p108 = scmp.ne.s32.totalorder %s93, %s107
      %p109 = scmp.eq.s32.totalorder %s22, 0
      %p110 = por %p108, %p109
      %s111 = ssub.s32 %s23, %s35
      %p112 = scmp.eq.s32.totalorder %s111, 0
      %s114 = sadd.s32 %s113, 1
      %s115 = scalar_select %p112, %s113, %s114
      %p118 = pneg %p112
      %p119 = scmp.eq.s32.totalorder %s16, 13
      %p120 = por %p118, %p119
      %p121 = scmp.ne.s32.totalorder %s113, %s116
      %p122 = scmp.eq.s32.totalorder %s16, 0
      %p123 = por %p121, %p122
      %p124 = scmp.ne.s32.totalorder %s113, %s116
      %p125 = scmp.eq.s32.totalorder %s21, 13
      %p126 = por %p124, %p125
      %p127 = scmp.ne.s32.totalorder %s116, %s117
      %p128 = scmp.eq.s32.totalorder %s21, 0
      %p129 = por %p127, %p128
      %p130 = scmp.ne.s32.totalorder %s116, %s117
      %p131 = scmp.eq.s32.totalorder %s22, 13
      %p132 = por %p130, %p131
      %p134 = scmp.ne.s32.totalorder %s117, %s133
      %p135 = scmp.eq.s32.totalorder %s22, 0
      %p136 = por %p134, %p135
      %p137 = scmp.le.s32.totalorder 1, %s16
      %p138 = scmp.lt.s32.totalorder %s16, 15
      %p139 = pnand %p137, %p138
      %p140 = pneg %p139
      // Predicated region
      $region9: #{tpu_custom_call.1} parent=5 // pred_check
        _
      $region10: #{tpu_custom_call.1} parent=5 // pred_check_branch
        %142 = sbr.rel (%p139) target = $region12
      $region11: #{tpu_custom_call.1} parent=5 // pred_region
        %s143 = ssub.s32 %s16, 1
        // Predicated region
        $region13: #{tpu_custom_call.1} parent=11 // pred_check
          %p144 = pneg %p103
        $region14: #{tpu_custom_call.1} parent=11 // pred_check_branch
          %146 = sbr.rel (%p144) target = $region16
        $region15: #{tpu_custom_call.1} parent=11 // pred_region
          %s148 = ssub.s32 16, 16
          %149 = vsyncadd [#allocation7], %s148
          %s151 = sshll.u32 [#allocation8], 4
          %s152 = int_to_ptr.vmem [resolvable:$true] %s151
          %154 = dma.hbm_to_vmem [thread:$0]  %s2, 16, %s152, [#allocation7]
        $region16: #{tpu_custom_call.1} parent=11 // pred_fallthru
          _
      $region12: #{tpu_custom_call.1} parent=5 // pred_fallthru
        _
      %p155 = scmp.lt.s32.totalorder %s16, 14
      // Predicated region
      $region17: #{tpu_custom_call.1} parent=5 // pred_check
        %p156 = pneg %p155
      $region18: #{tpu_custom_call.1} parent=5 // pred_check_branch
        %158 = sbr.rel (%p156) target = $region20
      $region19: #{tpu_custom_call.1} parent=5 // pred_region
        // Predicated region
        $region21: #{tpu_custom_call.1} parent=19 // pred_check
          %p159 = pneg %p50
        $region22: #{tpu_custom_call.1} parent=19 // pred_check_branch
          %161 = sbr.rel (%p159) target = $region24
        $region23: #{tpu_custom_call.1} parent=19 // pred_region
          %s162 = sand.u32 %s40, 1
          %s163 = scalar_lea.sflag [#allocation4], %s162
          %s164 = sand.u32 %s40, 1
          %s165 = smul.addr %s164, 128
          %s166 = scalar_lea.vmem [#allocation3], %s165
          %s167 = smul.u32 16, %s24
          %s169 = ssub.s32 2048, 2048
          %170 = vsyncadd %s163, %s169
          %s171 = smul.addr %s23, 224
          %s172 = sadd.s32 %s167, %s171
          %s173 = smul.addr %s172, 128
          %s174 = scalar_lea.hbm %s0, %s173
          %s176 = sshll.u32 %s166, 4
          %s177 = int_to_ptr.vmem [resolvable:$true] %s176
          %179 = dma.hbm_to_vmem [thread:$0]  %s174, 2048, %s177, %s163
        $region24: #{tpu_custom_call.1} parent=19 // pred_fallthru
          _
        // Predicated region
        $region25: #{tpu_custom_call.1} parent=19 // pred_check
          %p180 = pneg %p76
        $region26: #{tpu_custom_call.1} parent=19 // pred_check_branch
          %182 = sbr.rel (%p180) target = $region28
        $region27: #{tpu_custom_call.1} parent=19 // pred_region
          %s183 = sand.u32 %s16, 1
          %s184 = scalar_lea.sflag [#allocation7], %s183
          %s185 = sand.u32 %s66, 1
          %s186 = smul.addr %s185, 2048
          %s187 = scalar_lea.vmem [#allocation6], %s186
          %s188 = smul.u32 256, %s24
          %s190 = ssub.s32 32768, 32768
          %191 = vsyncadd %s184, %s190
          %s192 = smul.addr %s188, 128
          %s193 = scalar_lea.hbm %s1, %s192
          %s194 = sshll.u32 %s187, 4
          %s195 = int_to_ptr.vmem [resolvable:$true] %s194
          %200 = dma.hbm_to_vmem [thread:$0]  %s193, 32768, %s195, %s184, 128, 128, 8
        $region28: #{tpu_custom_call.1} parent=19 // pred_fallthru
          _
      $region20: #{tpu_custom_call.1} parent=5 // pred_fallthru
        _
      %p201 = scmp.le.s32.totalorder 1, %s16
      %p202 = scmp.lt.s32.totalorder %s16, 15
      %p203 = pnand %p201, %p202
      %p204 = pneg %p203
      // Predicated region
      $region29: #{tpu_custom_call.1} parent=5 // pred_check
        _
      $region30: #{tpu_custom_call.1} parent=5 // pred_check_branch
        %206 = sbr.rel (%p203) target = $region32
      $region31: #{tpu_custom_call.1} parent=5 // pred_region
        %s207 = ssub.s32 %s16, 1
        %s208 = sand.u32 %s43, 1
        %s209 = scalar_lea.sflag [#allocation4], %s208
        %s210 = sand.u32 %s43, 1
        %s211 = smul.addr %s210, 128
        %s212 = scalar_lea.vmem [#allocation3], %s211
        // Predicated region
        $region33: #{tpu_custom_call.1} parent=31 // pred_check
          %p213 = pneg %p56
        $region34: #{tpu_custom_call.1} parent=31 // pred_check_branch
          %215 = sbr.rel (%p213) target = $region36
        $region35: #{tpu_custom_call.1} parent=31 // pred_region
          %216 = dma.done %s209, 2048
        $region36: #{tpu_custom_call.1} parent=31 // pred_fallthru
          _
        %s217 = sand.u32 %s21, 1
        %s218 = scalar_lea.sflag [#allocation7], %s217
        %s219 = sand.u32 %s69, 1
        %s220 = smul.addr %s219, 2048
        %s221 = scalar_lea.vmem [#allocation6], %s220
        // Predicated region
        $region37: #{tpu_custom_call.1} parent=31 // pred_check
          %p222 = pneg %p82
        $region38: #{tpu_custom_call.1} parent=31 // pred_check_branch
          %224 = sbr.rel (%p222) target = $region40
        $region39: #{tpu_custom_call.1} parent=31 // pred_region
          %225 = dma.done %s218, 32768
        $region40: #{tpu_custom_call.1} parent=31 // pred_fallthru
          _
        // Predicated region
        $region41: #{tpu_custom_call.1} parent=31 // pred_check
          %p226 = pneg %p103
        $region42: #{tpu_custom_call.1} parent=31 // pred_check_branch
          %228 = sbr.rel (%p226) target = $region44
        $region43: #{tpu_custom_call.1} parent=31 // pred_region
          %229 = dma.done [#allocation7], 16
        $region44: #{tpu_custom_call.1} parent=31 // pred_fallthru
          _
        %s230 = sand.u32 %s43, 1
        %s231 = scalar_lea.sflag [#allocation4], %s230
        %s232 = sand.u32 %s43, 1
        %s233 = smul.addr %s232, 128
        %s234 = scalar_lea.vmem [#allocation3], %s233
        %p235 = pneg %p56
        %p236 = pneg %p53
        %s237 = sand.u32 %s21, 1
        %s238 = scalar_lea.sflag [#allocation7], %s237
        %s239 = sand.u32 %s69, 1
        %s240 = smul.addr %s239, 2048
        %s241 = scalar_lea.vmem [#allocation6], %s240
        %p242 = pneg %p82
        %p243 = pneg %p79
        %p244 = pneg %p103
        %p245 = pneg %p100
        %p246 = pneg %p129
        %p247 = pneg %p126
        %s248 = smul.u32 16, %s26
        %s249 = smul.u32 256, %s26
        %p250 = scmp.eq.s32.totalorder %s26, 0
        // Predicated region
        $region45: #{tpu_custom_call.1} parent=31 // pred_check
          %p251 = pneg %p250
        $region46: #{tpu_custom_call.1} parent=31 // pred_check_branch
          %253 = sbr.rel (%p251) target = $region48
        $region47: #{tpu_custom_call.1} parent=31 // pred_region
          %254 = vst [vmem:[#allocation2] sm:$0xff] 0.0
        $region48: #{tpu_custom_call.1} parent=31 // pred_fallthru
          _
        %v255 = vld [vmem:[#allocation2] sm:$0xff]
        %v256 = vld [vmem:[%s212] sm:$0xff]
        %v257 = vld [vmem:[%s212 + $0x8] sm:$0xff]
        %v258 = vld [vmem:[%s212 + $0x10] sm:$0xff]
        %v259 = vld [vmem:[%s212 + $0x18] sm:$0xff]
        %v260 = vld [vmem:[%s212 + $0x20] sm:$0xff]
        %v261 = vld [vmem:[%s212 + $0x28] sm:$0xff]
        %v262 = vld [vmem:[%s212 + $0x30] sm:$0xff]
        %v263 = vld [vmem:[%s212 + $0x38] sm:$0xff]
        %v264 = vld [vmem:[%s212 + $0x40] sm:$0xff]
        %v265 = vld [vmem:[%s212 + $0x48] sm:$0xff]
        %v266 = vld [vmem:[%s212 + $0x50] sm:$0xff]
        %v267 = vld [vmem:[%s212 + $0x58] sm:$0xff]
        %v268 = vld [vmem:[%s212 + $0x60] sm:$0xff]
        %v269 = vld [vmem:[%s212 + $0x68] sm:$0xff]
        %v270 = vld [vmem:[%s212 + $0x70] sm:$0xff]
        %v271 = vld [vmem:[%s212 + $0x78] sm:$0xff]
        %v272 = vld [vmem:[%s221] sm:$0xff]
        %v273 = vld [vmem:[%s221 + $0x8] sm:$0xff]
        %v274 = vld [vmem:[%s221 + $0x10] sm:$0xff]
        %v275 = vld [vmem:[%s221 + $0x18] sm:$0xff]
        %v276 = vld [vmem:[%s221 + $0x20] sm:$0xff]
        %v277 = vld [vmem:[%s221 + $0x28] sm:$0xff]
        %v278 = vld [vmem:[%s221 + $0x30] sm:$0xff]
        %v279 = vld [vmem:[%s221 + $0x38] sm:$0xff]
        %v280 = vld [vmem:[%s221 + $0x40] sm:$0xff]
        %v281 = vld [vmem:[%s221 + $0x48] sm:$0xff]
        %v282 = vld [vmem:[%s221 + $0x50] sm:$0xff]
        %v283 = vld [vmem:[%s221 + $0x58] sm:$0xff]
        %v284 = vld [vmem:[%s221 + $0x60] sm:$0xff]
        %v285 = vld [vmem:[%s221 + $0x68] sm:$0xff]
        %v286 = vld [vmem:[%s221 + $0x70] sm:$0xff]
        %v287 = vld [vmem:[%s221 + $0x78] sm:$0xff]
        %v288 = vld [vmem:[%s221 + $0x80] sm:$0xff]
        %v289 = vld [vmem:[%s221 + $0x88] sm:$0xff]
        %v290 = vld [vmem:[%s221 + $0x90] sm:$0xff]
        %v291 = vld [vmem:[%s221 + $0x98] sm:$0xff]
        %v292 = vld [vmem:[%s221 + $0xa0] sm:$0xff]
        %v293 = vld [vmem:[%s221 + $0xa8] sm:$0xff]
        %v294 = vld [vmem:[%s221 + $0xb0] sm:$0xff]
        %v295 = vld [vmem:[%s221 + $0xb8] sm:$0xff]
        %v296 = vld [vmem:[%s221 + $0xc0] sm:$0xff]
        %v297 = vld [vmem:[%s221 + $0xc8] sm:$0xff]
        %v298 = vld [vmem:[%s221 + $0xd0] sm:$0xff]
        %v299 = vld [vmem:[%s221 + $0xd8] sm:$0xff]
        %v300 = vld [vmem:[%s221 + $0xe0] sm:$0xff]
        %v301 = vld [vmem:[%s221 + $0xe8] sm:$0xff]
        %v302 = vld [vmem:[%s221 + $0xf0] sm:$0xff]
        %v303 = vld [vmem:[%s221 + $0xf8] sm:$0xff]
        %v304 = vld [vmem:[%s221 + $0x100] sm:$0xff]
        %v305 = vld [vmem:[%s221 + $0x108] sm:$0xff]
        %v306 = vld [vmem:[%s221 + $0x110] sm:$0xff]
        %v307 = vld [vmem:[%s221 + $0x118] sm:$0xff]
        %v308 = vld [vmem:[%s221 + $0x120] sm:$0xff]
        %v309 = vld [vmem:[%s221 + $0x128] sm:$0xff]
        %v310 = vld [vmem:[%s221 + $0x130] sm:$0xff]
        %v311 = vld [vmem:[%s221 + $0x138] sm:$0xff]
        %v312 = vld [vmem:[%s221 + $0x140] sm:$0xff]
        %v313 = vld [vmem:[%s221 + $0x148] sm:$0xff]
        %v314 = vld [vmem:[%s221 + $0x150] sm:$0xff]
        %v315 = vld [vmem:[%s221 + $0x158] sm:$0xff]
        %v316 = vld [vmem:[%s221 + $0x160] sm:$0xff]
        %v317 = vld [vmem:[%s221 + $0x168] sm:$0xff]
        %v318 = vld [vmem:[%s221 + $0x170] sm:$0xff]
        %v319 = vld [vmem:[%s221 + $0x178] sm:$0xff]
        %v320 = vld [vmem:[%s221 + $0x180] sm:$0xff]
        %v321 = vld [vmem:[%s221 + $0x188] sm:$0xff]
        %v322 = vld [vmem:[%s221 + $0x190] sm:$0xff]
        %v323 = vld [vmem:[%s221 + $0x198] sm:$0xff]
        %v324 = vld [vmem:[%s221 + $0x1a0] sm:$0xff]
        %v325 = vld [vmem:[%s221 + $0x1a8] sm:$0xff]
        %v326 = vld [vmem:[%s221 + $0x1b0] sm:$0xff]
        %v327 = vld [vmem:[%s221 + $0x1b8] sm:$0xff]
        %v328 = vld [vmem:[%s221 + $0x1c0] sm:$0xff]
        %v329 = vld [vmem:[%s221 + $0x1c8] sm:$0xff]
        %v330 = vld [vmem:[%s221 + $0x1d0] sm:$0xff]
        %v331 = vld [vmem:[%s221 + $0x1d8] sm:$0xff]
        %v332 = vld [vmem:[%s221 + $0x1e0] sm:$0xff]
        %v333 = vld [vmem:[%s221 + $0x1e8] sm:$0xff]
        %v334 = vld [vmem:[%s221 + $0x1f0] sm:$0xff]
        %v335 = vld [vmem:[%s221 + $0x1f8] sm:$0xff]
        %v336 = vld [vmem:[%s221 + $0x200] sm:$0xff]
        %v337 = vld [vmem:[%s221 + $0x208] sm:$0xff]
        %v338 = vld [vmem:[%s221 + $0x210] sm:$0xff]
        %v339 = vld [vmem:[%s221 + $0x218] sm:$0xff]
        %v340 = vld [vmem:[%s221 + $0x220] sm:$0xff]
        %v341 = vld [vmem:[%s221 + $0x228] sm:$0xff]
        %v342 = vld [vmem:[%s221 + $0x230] sm:$0xff]
        %v343 = vld [vmem:[%s221 + $0x238] sm:$0xff]
        %v344 = vld [vmem:[%s221 + $0x240] sm:$0xff]
        %v345 = vld [vmem:[%s221 + $0x248] sm:$0xff]
        %v346 = vld [vmem:[%s221 + $0x250] sm:$0xff]
        %v347 = vld [vmem:[%s221 + $0x258] sm:$0xff]
        %v348 = vld [vmem:[%s221 + $0x260] sm:$0xff]
        %v349 = vld [vmem:[%s221 + $0x268] sm:$0xff]
        %v350 = vld [vmem:[%s221 + $0x270] sm:$0xff]
        %v351 = vld [vmem:[%s221 + $0x278] sm:$0xff]
        %v352 = vld [vmem:[%s221 + $0x280] sm:$0xff]
        %v353 = vld [vmem:[%s221 + $0x288] sm:$0xff]
        %v354 = vld [vmem:[%s221 + $0x290] sm:$0xff]
        %v355 = vld [vmem:[%s221 + $0x298] sm:$0xff]
        %v356 = vld [vmem:[%s221 + $0x2a0] sm:$0xff]
        %v357 = vld [vmem:[%s221 + $0x2a8] sm:$0xff]
        %v358 = vld [vmem:[%s221 + $0x2b0] sm:$0xff]
        %v359 = vld [vmem:[%s221 + $0x2b8] sm:$0xff]
        %v360 = vld [vmem:[%s221 + $0x2c0] sm:$0xff]
        %v361 = vld [vmem:[%s221 + $0x2c8] sm:$0xff]
        %v362 = vld [vmem:[%s221 + $0x2d0] sm:$0xff]
        %v363 = vld [vmem:[%s221 + $0x2d8] sm:$0xff]
        %v364 = vld [vmem:[%s221 + $0x2e0] sm:$0xff]
        %v365 = vld [vmem:[%s221 + $0x2e8] sm:$0xff]
        %v366 = vld [vmem:[%s221 + $0x2f0] sm:$0xff]
        %v367 = vld [vmem:[%s221 + $0x2f8] sm:$0xff]
        %v368 = vld [vmem:[%s221 + $0x300] sm:$0xff]
        %v369 = vld [vmem:[%s221 + $0x308] sm:$0xff]
        %v370 = vld [vmem:[%s221 + $0x310] sm:$0xff]
        %v371 = vld [vmem:[%s221 + $0x318] sm:$0xff]
        %v372 = vld [vmem:[%s221 + $0x320] sm:$0xff]
        %v373 = vld [vmem:[%s221 + $0x328] sm:$0xff]
        %v374 = vld [vmem:[%s221 + $0x330] sm:$0xff]
        %v375 = vld [vmem:[%s221 + $0x338] sm:$0xff]
        %v376 = vld [vmem:[%s221 + $0x340] sm:$0xff]
        %v377 = vld [vmem:[%s221 + $0x348] sm:$0xff]
        %v378 = vld [vmem:[%s221 + $0x350] sm:$0xff]
        %v379 = vld [vmem:[%s221 + $0x358] sm:$0xff]
        %v380 = vld [vmem:[%s221 + $0x360] sm:$0xff]
        %v381 = vld [vmem:[%s221 + $0x368] sm:$0xff]
        %v382 = vld [vmem:[%s221 + $0x370] sm:$0xff]
        %v383 = vld [vmem:[%s221 + $0x378] sm:$0xff]
        %v384 = vld [vmem:[%s221 + $0x380] sm:$0xff]
        %v385 = vld [vmem:[%s221 + $0x388] sm:$0xff]
        %v386 = vld [vmem:[%s221 + $0x390] sm:$0xff]
        %v387 = vld [vmem:[%s221 + $0x398] sm:$0xff]
        %v388 = vld [vmem:[%s221 + $0x3a0] sm:$0xff]
        %v389 = vld [vmem:[%s221 + $0x3a8] sm:$0xff]
        %v390 = vld [vmem:[%s221 + $0x3b0] sm:$0xff]
        %v391 = vld [vmem:[%s221 + $0x3b8] sm:$0xff]
        %v392 = vld [vmem:[%s221 + $0x3c0] sm:$0xff]
        %v393 = vld [vmem:[%s221 + $0x3c8] sm:$0xff]
        %v394 = vld [vmem:[%s221 + $0x3d0] sm:$0xff]
        %v395 = vld [vmem:[%s221 + $0x3d8] sm:$0xff]
        %v396 = vld [vmem:[%s221 + $0x3e0] sm:$0xff]
        %v397 = vld [vmem:[%s221 + $0x3e8] sm:$0xff]
        %v398 = vld [vmem:[%s221 + $0x3f0] sm:$0xff]
        %v399 = vld [vmem:[%s221 + $0x3f8] sm:$0xff]
        %v400 = vld [vmem:[%s221 + $0x400] sm:$0xff]
        %v401 = vld [vmem:[%s221 + $0x408] sm:$0xff]
        %v402 = vld [vmem:[%s221 + $0x410] sm:$0xff]
        %v403 = vld [vmem:[%s221 + $0x418] sm:$0xff]
        %v404 = vld [vmem:[%s221 + $0x420] sm:$0xff]
        %v405 = vld [vmem:[%s221 + $0x428] sm:$0xff]
        %v406 = vld [vmem:[%s221 + $0x430] sm:$0xff]
        %v407 = vld [vmem:[%s221 + $0x438] sm:$0xff]
        %v408 = vld [vmem:[%s221 + $0x440] sm:$0xff]
        %v409 = vld [vmem:[%s221 + $0x448] sm:$0xff]
        %v410 = vld [vmem:[%s221 + $0x450] sm:$0xff]
        %v411 = vld [vmem:[%s221 + $0x458] sm:$0xff]
        %v412 = vld [vmem:[%s221 + $0x460] sm:$0xff]
        %v413 = vld [vmem:[%s221 + $0x468] sm:$0xff]
        %v414 = vld [vmem:[%s221 + $0x470] sm:$0xff]
        %v415 = vld [vmem:[%s221 + $0x478] sm:$0xff]
        %v416 = vld [vmem:[%s221 + $0x480] sm:$0xff]
        %v417 = vld [vmem:[%s221 + $0x488] sm:$0xff]
        %v418 = vld [vmem:[%s221 + $0x490] sm:$0xff]
        %v419 = vld [vmem:[%s221 + $0x498] sm:$0xff]
        %v420 = vld [vmem:[%s221 + $0x4a0] sm:$0xff]
        %v421 = vld [vmem:[%s221 + $0x4a8] sm:$0xff]
        %v422 = vld [vmem:[%s221 + $0x4b0] sm:$0xff]
        %v423 = vld [vmem:[%s221 + $0x4b8] sm:$0xff]
        %v424 = vld [vmem:[%s221 + $0x4c0] sm:$0xff]
        %v425 = vld [vmem:[%s221 + $0x4c8] sm:$0xff]
        %v426 = vld [vmem:[%s221 + $0x4d0] sm:$0xff]
        %v427 = vld [vmem:[%s221 + $0x4d8] sm:$0xff]
        %v428 = vld [vmem:[%s221 + $0x4e0] sm:$0xff]
        %v429 = vld [vmem:[%s221 + $0x4e8] sm:$0xff]
        %v430 = vld [vmem:[%s221 + $0x4f0] sm:$0xff]
        %v431 = vld [vmem:[%s221 + $0x4f8] sm:$0xff]
        %v432 = vld [vmem:[%s221 + $0x500] sm:$0xff]
        %v433 = vld [vmem:[%s221 + $0x508] sm:$0xff]
        %v434 = vld [vmem:[%s221 + $0x510] sm:$0xff]
        %v435 = vld [vmem:[%s221 + $0x518] sm:$0xff]
        %v436 = vld [vmem:[%s221 + $0x520] sm:$0xff]
        %v437 = vld [vmem:[%s221 + $0x528] sm:$0xff]
        %v438 = vld [vmem:[%s221 + $0x530] sm:$0xff]
        %v439 = vld [vmem:[%s221 + $0x538] sm:$0xff]
        %v440 = vld [vmem:[%s221 + $0x540] sm:$0xff]
        %v441 = vld [vmem:[%s221 + $0x548] sm:$0xff]
        %v442 = vld [vmem:[%s221 + $0x550] sm:$0xff]
        %v443 = vld [vmem:[%s221 + $0x558] sm:$0xff]
        %v444 = vld [vmem:[%s221 + $0x560] sm:$0xff]
        %v445 = vld [vmem:[%s221 + $0x568] sm:$0xff]
        %v446 = vld [vmem:[%s221 + $0x570] sm:$0xff]
        %v447 = vld [vmem:[%s221 + $0x578] sm:$0xff]
        %v448 = vld [vmem:[%s221 + $0x580] sm:$0xff]
        %v449 = vld [vmem:[%s221 + $0x588] sm:$0xff]
        %v450 = vld [vmem:[%s221 + $0x590] sm:$0xff]
        %v451 = vld [vmem:[%s221 + $0x598] sm:$0xff]
        %v452 = vld [vmem:[%s221 + $0x5a0] sm:$0xff]
        %v453 = vld [vmem:[%s221 + $0x5a8] sm:$0xff]
        %v454 = vld [vmem:[%s221 + $0x5b0] sm:$0xff]
        %v455 = vld [vmem:[%s221 + $0x5b8] sm:$0xff]
        %v456 = vld [vmem:[%s221 + $0x5c0] sm:$0xff]
        %v457 = vld [vmem:[%s221 + $0x5c8] sm:$0xff]
        %v458 = vld [vmem:[%s221 + $0x5d0] sm:$0xff]
        %v459 = vld [vmem:[%s221 + $0x5d8] sm:$0xff]
        %v460 = vld [vmem:[%s221 + $0x5e0] sm:$0xff]
        %v461 = vld [vmem:[%s221 + $0x5e8] sm:$0xff]
        %v462 = vld [vmem:[%s221 + $0x5f0] sm:$0xff]
        %v463 = vld [vmem:[%s221 + $0x5f8] sm:$0xff]
        %v464 = vld [vmem:[%s221 + $0x600] sm:$0xff]
        %v465 = vld [vmem:[%s221 + $0x608] sm:$0xff]
        %v466 = vld [vmem:[%s221 + $0x610] sm:$0xff]
        %v467 = vld [vmem:[%s221 + $0x618] sm:$0xff]
        %v468 = vld [vmem:[%s221 + $0x620] sm:$0xff]
        %v469 = vld [vmem:[%s221 + $0x628] sm:$0xff]
        %v470 = vld [vmem:[%s221 + $0x630] sm:$0xff]
        %v471 = vld [vmem:[%s221 + $0x638] sm:$0xff]
        %v472 = vld [vmem:[%s221 + $0x640] sm:$0xff]
        %v473 = vld [vmem:[%s221 + $0x648] sm:$0xff]
        %v474 = vld [vmem:[%s221 + $0x650] sm:$0xff]
        %v475 = vld [vmem:[%s221 + $0x658] sm:$0xff]
        %v476 = vld [vmem:[%s221 + $0x660] sm:$0xff]
        %v477 = vld [vmem:[%s221 + $0x668] sm:$0xff]
        %v478 = vld [vmem:[%s221 + $0x670] sm:$0xff]
        %v479 = vld [vmem:[%s221 + $0x678] sm:$0xff]
        %v480 = vld [vmem:[%s221 + $0x680] sm:$0xff]
        %v481 = vld [vmem:[%s221 + $0x688] sm:$0xff]
        %v482 = vld [vmem:[%s221 + $0x690] sm:$0xff]
        %v483 = vld [vmem:[%s221 + $0x698] sm:$0xff]
        %v484 = vld [vmem:[%s221 + $0x6a0] sm:$0xff]
        %v485 = vld [vmem:[%s221 + $0x6a8] sm:$0xff]
        %v486 = vld [vmem:[%s221 + $0x6b0] sm:$0xff]
        %v487 = vld [vmem:[%s221 + $0x6b8] sm:$0xff]
        %v488 = vld [vmem:[%s221 + $0x6c0] sm:$0xff]
        %v489 = vld [vmem:[%s221 + $0x6c8] sm:$0xff]
        %v490 = vld [vmem:[%s221 + $0x6d0] sm:$0xff]
        %v491 = vld [vmem:[%s221 + $0x6d8] sm:$0xff]
        %v492 = vld [vmem:[%s221 + $0x6e0] sm:$0xff]
        %v493 = vld [vmem:[%s221 + $0x6e8] sm:$0xff]
        %v494 = vld [vmem:[%s221 + $0x6f0] sm:$0xff]
        %v495 = vld [vmem:[%s221 + $0x6f8] sm:$0xff]
        %v496 = vld [vmem:[%s221 + $0x700] sm:$0xff]
        %v497 = vld [vmem:[%s221 + $0x708] sm:$0xff]
        %v498 = vld [vmem:[%s221 + $0x710] sm:$0xff]
        %v499 = vld [vmem:[%s221 + $0x718] sm:$0xff]
        %v500 = vld [vmem:[%s221 + $0x720] sm:$0xff]
        %v501 = vld [vmem:[%s221 + $0x728] sm:$0xff]
        %v502 = vld [vmem:[%s221 + $0x730] sm:$0xff]
        %v503 = vld [vmem:[%s221 + $0x738] sm:$0xff]
        %v504 = vld [vmem:[%s221 + $0x740] sm:$0xff]
        %v505 = vld [vmem:[%s221 + $0x748] sm:$0xff]
        %v506 = vld [vmem:[%s221 + $0x750] sm:$0xff]
        %v507 = vld [vmem:[%s221 + $0x758] sm:$0xff]
        %v508 = vld [vmem:[%s221 + $0x760] sm:$0xff]
        %v509 = vld [vmem:[%s221 + $0x768] sm:$0xff]
        %v510 = vld [vmem:[%s221 + $0x770] sm:$0xff]
        %v511 = vld [vmem:[%s221 + $0x778] sm:$0xff]
        %v512 = vld [vmem:[%s221 + $0x780] sm:$0xff]
        %v513 = vld [vmem:[%s221 + $0x788] sm:$0xff]
        %v514 = vld [vmem:[%s221 + $0x790] sm:$0xff]
        %v515 = vld [vmem:[%s221 + $0x798] sm:$0xff]
        %v516 = vld [vmem:[%s221 + $0x7a0] sm:$0xff]
        %v517 = vld [vmem:[%s221 + $0x7a8] sm:$0xff]
        %v518 = vld [vmem:[%s221 + $0x7b0] sm:$0xff]
        %v519 = vld [vmem:[%s221 + $0x7b8] sm:$0xff]
        %v520 = vld [vmem:[%s221 + $0x7c0] sm:$0xff]
        %v521 = vld [vmem:[%s221 + $0x7c8] sm:$0xff]
        %v522 = vld [vmem:[%s221 + $0x7d0] sm:$0xff]
        %v523 = vld [vmem:[%s221 + $0x7d8] sm:$0xff]
        %v524 = vld [vmem:[%s221 + $0x7e0] sm:$0xff]
        %v525 = vld [vmem:[%s221 + $0x7e8] sm:$0xff]
        %v526 = vld [vmem:[%s221 + $0x7f0] sm:$0xff]
        %v527 = vld [vmem:[%s221 + $0x7f8] sm:$0xff]
        %528 = vmatprep.subr.mxu0 0.0
        %529 = vmatpush1.msra.mxu0 %v287
        %530 = vmatprep.subr.mxu0 0.0
        %531 = vmatpush1.msra.mxu0 %v286
        %532 = vmatprep.subr.mxu0 0.0
        %533 = vmatpush1.msra.mxu0 %v285
        %534 = vmatprep.subr.mxu0 0.0
        %535 = vmatpush1.msra.mxu0 %v284
        %536 = vmatprep.subr.mxu0 0.0
        %537 = vmatpush1.msra.mxu0 %v283
        %538 = vmatprep.subr.mxu0 0.0
        %539 = vmatpush1.msra.mxu0 %v282
        %540 = vmatprep.subr.mxu0 0.0
        %541 = vmatpush1.msra.mxu0 %v281
        %542 = vmatprep.subr.mxu0 0.0
        %543 = vmatpush1.msra.mxu0 %v280
        %544 = vmatprep.subr.mxu0 0.0
        %545 = vmatpush1.msra.mxu0 %v279
        %546 = vmatprep.subr.mxu0 0.0
        %547 = vmatpush1.msra.mxu0 %v278
        %548 = vmatprep.subr.mxu0 0.0
        %549 = vmatpush1.msra.mxu0 %v277
        %550 = vmatprep.subr.mxu0 0.0
        %551 = vmatpush1.msra.mxu0 %v276
        %552 = vmatprep.subr.mxu0 0.0
        %553 = vmatpush1.msra.mxu0 %v275
        %554 = vmatprep.subr.mxu0 0.0
        %555 = vmatpush1.msra.mxu0 %v274
        %556 = vmatprep.subr.mxu0 0.0
        %557 = vmatpush1.msra.mxu0 %v273
        %558 = vmatprep.subr.mxu0 0.0
        %559 = vmatpush1.msra.mxu0 %v272
        %560 = vmatprep.subr.mxu0 0.0
        %561 = vmatpush2.msra.mxu0 %v303
        %562 = vmatprep.subr.mxu0 0.0
        %563 = vmatpush2.msra.mxu0 %v302
        %564 = vmatprep.subr.mxu0 0.0
        %565 = vmatpush2.msra.mxu0 %v301
        %566 = vmatprep.subr.mxu0 0.0
        %567 = vmatpush2.msra.mxu0 %v300
        %568 = vmatprep.subr.mxu0 0.0
        %569 = vmatpush2.msra.mxu0 %v299
        %570 = vmatprep.subr.mxu0 0.0
        %571 = vmatpush2.msra.mxu0 %v298
        %572 = vmatprep.subr.mxu0 0.0
        %573 = vmatpush2.msra.mxu0 %v297
        %574 = vmatprep.subr.mxu0 0.0
        %575 = vmatpush2.msra.mxu0 %v296
        %576 = vmatprep.subr.mxu0 0.0
        %577 = vmatpush2.msra.mxu0 %v295
        %578 = vmatprep.subr.mxu0 0.0
        %579 = vmatpush2.msra.mxu0 %v294
        %580 = vmatprep.subr.mxu0 0.0
        %581 = vmatpush2.msra.mxu0 %v293
        %582 = vmatprep.subr.mxu0 0.0
        %583 = vmatpush2.msra.mxu0 %v292
        %584 = vmatprep.subr.mxu0 0.0
        %585 = vmatpush2.msra.mxu0 %v291
        %586 = vmatprep.subr.mxu0 0.0
        %587 = vmatpush2.msra.mxu0 %v290
        %588 = vmatprep.subr.mxu0 0.0
        %589 = vmatpush2.msra.mxu0 %v289
        %590 = vmatprep.subr.mxu0 0.0
        %591 = vmatpush2.msra.mxu0 %v288
        %592 = vmatprep.mubr.f32.mxu0 %v257
        %593 = vmatmul.mubr.f32.gmra.mxu0 %v256
        %v594 = vpop.f32.mrf.mxu0
        %v595 = vadd.f32 0.0, %v594
        %v596 = vpop.f32.mrf.mxu0
        %597 = vdwg.mxu0
        %598 = vmatprep.subr.mxu0 0.0
        %599 = vmatpush1.msra.mxu0 %v319
        %600 = vmatprep.subr.mxu0 0.0
        %601 = vmatpush1.msra.mxu0 %v318
        %602 = vmatprep.subr.mxu0 0.0
        %603 = vmatpush1.msra.mxu0 %v317
        %604 = vmatprep.subr.mxu0 0.0
        %605 = vmatpush1.msra.mxu0 %v316
        %606 = vmatprep.subr.mxu0 0.0
        %607 = vmatpush1.msra.mxu0 %v315
        %608 = vmatprep.subr.mxu0 0.0
        %609 = vmatpush1.msra.mxu0 %v314
        %610 = vmatprep.subr.mxu0 0.0
        %611 = vmatpush1.msra.mxu0 %v313
        %612 = vmatprep.subr.mxu0 0.0
        %613 = vmatpush1.msra.mxu0 %v312
        %614 = vmatprep.subr.mxu0 0.0
        %615 = vmatpush1.msra.mxu0 %v311
        %616 = vmatprep.subr.mxu0 0.0
        %617 = vmatpush1.msra.mxu0 %v310
        %618 = vmatprep.subr.mxu0 0.0
        %619 = vmatpush1.msra.mxu0 %v309
        %620 = vmatprep.subr.mxu0 0.0
        %621 = vmatpush1.msra.mxu0 %v308
        %622 = vmatprep.subr.mxu0 0.0
        %623 = vmatpush1.msra.mxu0 %v307
        %624 = vmatprep.subr.mxu0 0.0
        %625 = vmatpush1.msra.mxu0 %v306
        %626 = vmatprep.subr.mxu0 0.0
        %627 = vmatpush1.msra.mxu0 %v305
        %628 = vmatprep.subr.mxu0 0.0
        %629 = vmatpush1.msra.mxu0 %v304
        %630 = vmatprep.subr.mxu0 0.0
        %631 = vmatpush2.msra.mxu0 %v335
        %632 = vmatprep.subr.mxu0 0.0
        %633 = vmatpush2.msra.mxu0 %v334
        %634 = vmatprep.subr.mxu0 0.0
        %635 = vmatpush2.msra.mxu0 %v333
        %636 = vmatprep.subr.mxu0 0.0
        %637 = vmatpush2.msra.mxu0 %v332
        %638 = vmatprep.subr.mxu0 0.0
        %639 = vmatpush2.msra.mxu0 %v331
        %640 = vmatprep.subr.mxu0 0.0
        %641 = vmatpush2.msra.mxu0 %v330
        %642 = vmatprep.subr.mxu0 0.0
        %643 = vmatpush2.msra.mxu0 %v329
        %644 = vmatprep.subr.mxu0 0.0
        %645 = vmatpush2.msra.mxu0 %v328
        %646 = vmatprep.subr.mxu0 0.0
        %647 = vmatpush2.msra.mxu0 %v327
        %648 = vmatprep.subr.mxu0 0.0
        %649 = vmatpush2.msra.mxu0 %v326
        %650 = vmatprep.subr.mxu0 0.0
        %651 = vmatpush2.msra.mxu0 %v325
        %652 = vmatprep.subr.mxu0 0.0
        %653 = vmatpush2.msra.mxu0 %v324
        %654 = vmatprep.subr.mxu0 0.0
        %655 = vmatpush2.msra.mxu0 %v323
        %656 = vmatprep.subr.mxu0 0.0
        %657 = vmatpush2.msra.mxu0 %v322
        %658 = vmatprep.subr.mxu0 0.0
        %659 = vmatpush2.msra.mxu0 %v321
        %660 = vmatprep.subr.mxu0 0.0
        %661 = vmatpush2.msra.mxu0 %v320
        %662 = vmatprep.mubr.f32.mxu0 %v259
        %663 = vmatmul.mubr.f32.gmra.mxu0 %v258
        %v664 = vpop.f32.mrf.mxu0
        %v665 = vadd.f32 %v595, %v664
        %v666 = vpop.f32.mrf.mxu0
        %667 = vdwg.mxu0
        %668 = vmatprep.subr.mxu0 0.0
        %669 = vmatpush1.msra.mxu0 %v351
        %670 = vmatprep.subr.mxu0 0.0
        %671 = vmatpush1.msra.mxu0 %v350
        %672 = vmatprep.subr.mxu0 0.0
        %673 = vmatpush1.msra.mxu0 %v349
        %674 = vmatprep.subr.mxu0 0.0
        %675 = vmatpush1.msra.mxu0 %v348
        %676 = vmatprep.subr.mxu0 0.0
        %677 = vmatpush1.msra.mxu0 %v347
        %678 = vmatprep.subr.mxu0 0.0
        %679 = vmatpush1.msra.mxu0 %v346
        %680 = vmatprep.subr.mxu0 0.0
        %681 = vmatpush1.msra.mxu0 %v345
        %682 = vmatprep.subr.mxu0 0.0
        %683 = vmatpush1.msra.mxu0 %v344
        %684 = vmatprep.subr.mxu0 0.0
        %685 = vmatpush1.msra.mxu0 %v343
        %686 = vmatprep.subr.mxu0 0.0
        %687 = vmatpush1.msra.mxu0 %v342
        %688 = vmatprep.subr.mxu0 0.0
        %689 = vmatpush1.msra.mxu0 %v341
        %690 = vmatprep.subr.mxu0 0.0
        %691 = vmatpush1.msra.mxu0 %v340
        %692 = vmatprep.subr.mxu0 0.0
        %693 = vmatpush1.msra.mxu0 %v339
        %694 = vmatprep.subr.mxu0 0.0
        %695 = vmatpush1.msra.mxu0 %v338
        %696 = vmatprep.subr.mxu0 0.0
        %697 = vmatpush1.msra.mxu0 %v337
        %698 = vmatprep.subr.mxu0 0.0
        %699 = vmatpush1.msra.mxu0 %v336
        %700 = vmatprep.subr.mxu0 0.0
        %701 = vmatpush2.msra.mxu0 %v367
        %702 = vmatprep.subr.mxu0 0.0
        %703 = vmatpush2.msra.mxu0 %v366
        %704 = vmatprep.subr.mxu0 0.0
        %705 = vmatpush2.msra.mxu0 %v365
        %706 = vmatprep.subr.mxu0 0.0
        %707 = vmatpush2.msra.mxu0 %v364
        %708 = vmatprep.subr.mxu0 0.0
        %709 = vmatpush2.msra.mxu0 %v363
        %710 = vmatprep.subr.mxu0 0.0
        %711 = vmatpush2.msra.mxu0 %v362
        %712 = vmatprep.subr.mxu0 0.0
        %713 = vmatpush2.msra.mxu0 %v361
        %714 = vmatprep.subr.mxu0 0.0
        %715 = vmatpush2.msra.mxu0 %v360
        %716 = vmatprep.subr.mxu0 0.0
        %717 = vmatpush2.msra.mxu0 %v359
        %718 = vmatprep.subr.mxu0 0.0
        %719 = vmatpush2.msra.mxu0 %v358
        %720 = vmatprep.subr.mxu0 0.0
        %721 = vmatpush2.msra.mxu0 %v357
        %722 = vmatprep.subr.mxu0 0.0
        %723 = vmatpush2.msra.mxu0 %v356
        %724 = vmatprep.subr.mxu0 0.0
        %725 = vmatpush2.msra.mxu0 %v355
        %726 = vmatprep.subr.mxu0 0.0
        %727 = vmatpush2.msra.mxu0 %v354
        %728 = vmatprep.subr.mxu0 0.0
        %729 = vmatpush2.msra.mxu0 %v353
        %730 = vmatprep.subr.mxu0 0.0
        %731 = vmatpush2.msra.mxu0 %v352
        %732 = vmatprep.mubr.f32.mxu0 %v261
        %733 = vmatmul.mubr.f32.gmra.mxu0 %v260
        %v734 = vpop.f32.mrf.mxu0
        %v735 = vadd.f32 %v665, %v734
        %v736 = vpop.f32.mrf.mxu0
        %737 = vdwg.mxu0
        %738 = vmatprep.subr.mxu0 0.0
        %739 = vmatpush1.msra.mxu0 %v383
        %740 = vmatprep.subr.mxu0 0.0
        %741 = vmatpush1.msra.mxu0 %v382
        %742 = vmatprep.subr.mxu0 0.0
        %743 = vmatpush1.msra.mxu0 %v381
        %744 = vmatprep.subr.mxu0 0.0
        %745 = vmatpush1.msra.mxu0 %v380
        %746 = vmatprep.subr.mxu0 0.0
        %747 = vmatpush1.msra.mxu0 %v379
        %748 = vmatprep.subr.mxu0 0.0
        %749 = vmatpush1.msra.mxu0 %v378
        %750 = vmatprep.subr.mxu0 0.0
        %751 = vmatpush1.msra.mxu0 %v377
        %752 = vmatprep.subr.mxu0 0.0
        %753 = vmatpush1.msra.mxu0 %v376
        %754 = vmatprep.subr.mxu0 0.0
        %755 = vmatpush1.msra.mxu0 %v375
        %756 = vmatprep.subr.mxu0 0.0
        %757 = vmatpush1.msra.mxu0 %v374
        %758 = vmatprep.subr.mxu0 0.0
        %759 = vmatpush1.msra.mxu0 %v373
        %760 = vmatprep.subr.mxu0 0.0
        %761 = vmatpush1.msra.mxu0 %v372
        %762 = vmatprep.subr.mxu0 0.0
        %763 = vmatpush1.msra.mxu0 %v371
        %764 = vmatprep.subr.mxu0 0.0
        %765 = vmatpush1.msra.mxu0 %v370
        %766 = vmatprep.subr.mxu0 0.0
        %767 = vmatpush1.msra.mxu0 %v369
        %768 = vmatprep.subr.mxu0 0.0
        %769 = vmatpush1.msra.mxu0 %v368
        %770 = vmatprep.subr.mxu0 0.0
        %771 = vmatpush2.msra.mxu0 %v399
        %772 = vmatprep.subr.mxu0 0.0
        %773 = vmatpush2.msra.mxu0 %v398
        %774 = vmatprep.subr.mxu0 0.0
        %775 = vmatpush2.msra.mxu0 %v397
        %776 = vmatprep.subr.mxu0 0.0
        %777 = vmatpush2.msra.mxu0 %v396
        %778 = vmatprep.subr.mxu0 0.0
        %779 = vmatpush2.msra.mxu0 %v395
        %780 = vmatprep.subr.mxu0 0.0
        %781 = vmatpush2.msra.mxu0 %v394
        %782 = vmatprep.subr.mxu0 0.0
        %783 = vmatpush2.msra.mxu0 %v393
        %784 = vmatprep.subr.mxu0 0.0
        %785 = vmatpush2.msra.mxu0 %v392
        %786 = vmatprep.subr.mxu0 0.0
        %787 = vmatpush2.msra.mxu0 %v391
        %788 = vmatprep.subr.mxu0 0.0
        %789 = vmatpush2.msra.mxu0 %v390
        %790 = vmatprep.subr.mxu0 0.0
        %791 = vmatpush2.msra.mxu0 %v389
        %792 = vmatprep.subr.mxu0 0.0
        %793 = vmatpush2.msra.mxu0 %v388
        %794 = vmatprep.subr.mxu0 0.0
        %795 = vmatpush2.msra.mxu0 %v387
        %796 = vmatprep.subr.mxu0 0.0
        %797 = vmatpush2.msra.mxu0 %v386
        %798 = vmatprep.subr.mxu0 0.0
        %799 = vmatpush2.msra.mxu0 %v385
        %800 = vmatprep.subr.mxu0 0.0
        %801 = vmatpush2.msra.mxu0 %v384
        %802 = vmatprep.mubr.f32.mxu0 %v263
        %803 = vmatmul.mubr.f32.gmra.mxu0 %v262
        %v804 = vpop.f32.mrf.mxu0
        %v805 = vadd.f32 %v735, %v804
        %v806 = vpop.f32.mrf.mxu0
        %807 = vdwg.mxu0
        %808 = vmatprep.subr.mxu0 0.0
        %809 = vmatpush1.msra.mxu0 %v415
        %810 = vmatprep.subr.mxu0 0.0
        %811 = vmatpush1.msra.mxu0 %v414
        %812 = vmatprep.subr.mxu0 0.0
        %813 = vmatpush1.msra.mxu0 %v413
        %814 = vmatprep.subr.mxu0 0.0
        %815 = vmatpush1.msra.mxu0 %v412
        %816 = vmatprep.subr.mxu0 0.0
        %817 = vmatpush1.msra.mxu0 %v411
        %818 = vmatprep.subr.mxu0 0.0
        %819 = vmatpush1.msra.mxu0 %v410
        %820 = vmatprep.subr.mxu0 0.0
        %821 = vmatpush1.msra.mxu0 %v409
        %822 = vmatprep.subr.mxu0 0.0
        %823 = vmatpush1.msra.mxu0 %v408
        %824 = vmatprep.subr.mxu0 0.0
        %825 = vmatpush1.msra.mxu0 %v407
        %826 = vmatprep.subr.mxu0 0.0
        %827 = vmatpush1.msra.mxu0 %v406
        %828 = vmatprep.subr.mxu0 0.0
        %829 = vmatpush1.msra.mxu0 %v405
        %830 = vmatprep.subr.mxu0 0.0
        %831 = vmatpush1.msra.mxu0 %v404
        %832 = vmatprep.subr.mxu0 0.0
        %833 = vmatpush1.msra.mxu0 %v403
        %834 = vmatprep.subr.mxu0 0.0
        %835 = vmatpush1.msra.mxu0 %v402
        %836 = vmatprep.subr.mxu0 0.0
        %837 = vmatpush1.msra.mxu0 %v401
        %838 = vmatprep.subr.mxu0 0.0
        %839 = vmatpush1.msra.mxu0 %v400
        %840 = vmatprep.subr.mxu0 0.0
        %841 = vmatpush2.msra.mxu0 %v431
        %842 = vmatprep.subr.mxu0 0.0
        %843 = vmatpush2.msra.mxu0 %v430
        %844 = vmatprep.subr.mxu0 0.0
        %845 = vmatpush2.msra.mxu0 %v429
        %846 = vmatprep.subr.mxu0 0.0
        %847 = vmatpush2.msra.mxu0 %v428
        %848 = vmatprep.subr.mxu0 0.0
        %849 = vmatpush2.msra.mxu0 %v427
        %850 = vmatprep.subr.mxu0 0.0
        %851 = vmatpush2.msra.mxu0 %v426
        %852 = vmatprep.subr.mxu0 0.0
        %853 = vmatpush2.msra.mxu0 %v425
        %854 = vmatprep.subr.mxu0 0.0
        %855 = vmatpush2.msra.mxu0 %v424
        %856 = vmatprep.subr.mxu0 0.0
        %857 = vmatpush2.msra.mxu0 %v423
        %858 = vmatprep.subr.mxu0 0.0
        %859 = vmatpush2.msra.mxu0 %v422
        %860 = vmatprep.subr.mxu0 0.0
        %861 = vmatpush2.msra.mxu0 %v421
        %862 = vmatprep.subr.mxu0 0.0
        %863 = vmatpush2.msra.mxu0 %v420
        %864 = vmatprep.subr.mxu0 0.0
        %865 = vmatpush2.msra.mxu0 %v419
        %866 = vmatprep.subr.mxu0 0.0
        %867 = vmatpush2.msra.mxu0 %v418
        %868 = vmatprep.subr.mxu0 0.0
        %869 = vmatpush2.msra.mxu0 %v417
        %870 = vmatprep.subr.mxu0 0.0
        %871 = vmatpush2.msra.mxu0 %v416
        %872 = vmatprep.mubr.f32.mxu0 %v265
        %873 = vmatmul.mubr.f32.gmra.mxu0 %v264
        %v874 = vpop.f32.mrf.mxu0
        %v875 = vadd.f32 %v805, %v874
        %v876 = vpop.f32.mrf.mxu0
        %877 = vdwg.mxu0
        %878 = vmatprep.subr.mxu0 0.0
        %879 = vmatpush1.msra.mxu0 %v447
        %880 = vmatprep.subr.mxu0 0.0
        %881 = vmatpush1.msra.mxu0 %v446
        %882 = vmatprep.subr.mxu0 0.0
        %883 = vmatpush1.msra.mxu0 %v445
        %884 = vmatprep.subr.mxu0 0.0
        %885 = vmatpush1.msra.mxu0 %v444
        %886 = vmatprep.subr.mxu0 0.0
        %887 = vmatpush1.msra.mxu0 %v443
        %888 = vmatprep.subr.mxu0 0.0
        %889 = vmatpush1.msra.mxu0 %v442
        %890 = vmatprep.subr.mxu0 0.0
        %891 = vmatpush1.msra.mxu0 %v441
        %892 = vmatprep.subr.mxu0 0.0
        %893 = vmatpush1.msra.mxu0 %v440
        %894 = vmatprep.subr.mxu0 0.0
        %895 = vmatpush1.msra.mxu0 %v439
        %896 = vmatprep.subr.mxu0 0.0
        %897 = vmatpush1.msra.mxu0 %v438
        %898 = vmatprep.subr.mxu0 0.0
        %899 = vmatpush1.msra.mxu0 %v437
        %900 = vmatprep.subr.mxu0 0.0
        %901 = vmatpush1.msra.mxu0 %v436
        %902 = vmatprep.subr.mxu0 0.0
        %903 = vmatpush1.msra.mxu0 %v435
        %904 = vmatprep.subr.mxu0 0.0
        %905 = vmatpush1.msra.mxu0 %v434
        %906 = vmatprep.subr.mxu0 0.0
        %907 = vmatpush1.msra.mxu0 %v433
        %908 = vmatprep.subr.mxu0 0.0
        %909 = vmatpush1.msra.mxu0 %v432
        %910 = vmatprep.subr.mxu0 0.0
        %911 = vmatpush2.msra.mxu0 %v463
        %912 = vmatprep.subr.mxu0 0.0
        %913 = vmatpush2.msra.mxu0 %v462
        %914 = vmatprep.subr.mxu0 0.0
        %915 = vmatpush2.msra.mxu0 %v461
        %916 = vmatprep.subr.mxu0 0.0
        %917 = vmatpush2.msra.mxu0 %v460
        %918 = vmatprep.subr.mxu0 0.0
        %919 = vmatpush2.msra.mxu0 %v459
        %920 = vmatprep.subr.mxu0 0.0
        %921 = vmatpush2.msra.mxu0 %v458
        %922 = vmatprep.subr.mxu0 0.0
        %923 = vmatpush2.msra.mxu0 %v457
        %924 = vmatprep.subr.mxu0 0.0
        %925 = vmatpush2.msra.mxu0 %v456
        %926 = vmatprep.subr.mxu0 0.0
        %927 = vmatpush2.msra.mxu0 %v455
        %928 = vmatprep.subr.mxu0 0.0
        %929 = vmatpush2.msra.mxu0 %v454
        %930 = vmatprep.subr.mxu0 0.0
        %931 = vmatpush2.msra.mxu0 %v453
        %932 = vmatprep.subr.mxu0 0.0
        %933 = vmatpush2.msra.mxu0 %v452
        %934 = vmatprep.subr.mxu0 0.0
        %935 = vmatpush2.msra.mxu0 %v451
        %936 = vmatprep.subr.mxu0 0.0
        %937 = vmatpush2.msra.mxu0 %v450
        %938 = vmatprep.subr.mxu0 0.0
        %939 = vmatpush2.msra.mxu0 %v449
        %940 = vmatprep.subr.mxu0 0.0
        %941 = vmatpush2.msra.mxu0 %v448
        %942 = vmatprep.mubr.f32.mxu0 %v267
        %943 = vmatmul.mubr.f32.gmra.mxu0 %v266
        %v944 = vpop.f32.mrf.mxu0
        %v945 = vadd.f32 %v875, %v944
        %v946 = vpop.f32.mrf.mxu0
        %947 = vdwg.mxu0
        %948 = vmatprep.subr.mxu0 0.0
        %949 = vmatpush1.msra.mxu0 %v479
        %950 = vmatprep.subr.mxu0 0.0
        %951 = vmatpush1.msra.mxu0 %v478
        %952 = vmatprep.subr.mxu0 0.0
        %953 = vmatpush1.msra.mxu0 %v477
        %954 = vmatprep.subr.mxu0 0.0
        %955 = vmatpush1.msra.mxu0 %v476
        %956 = vmatprep.subr.mxu0 0.0
        %957 = vmatpush1.msra.mxu0 %v475
        %958 = vmatprep.subr.mxu0 0.0
        %959 = vmatpush1.msra.mxu0 %v474
        %960 = vmatprep.subr.mxu0 0.0
        %961 = vmatpush1.msra.mxu0 %v473
        %962 = vmatprep.subr.mxu0 0.0
        %963 = vmatpush1.msra.mxu0 %v472
        %964 = vmatprep.subr.mxu0 0.0
        %965 = vmatpush1.msra.mxu0 %v471
        %966 = vmatprep.subr.mxu0 0.0
        %967 = vmatpush1.msra.mxu0 %v470
        %968 = vmatprep.subr.mxu0 0.0
        %969 = vmatpush1.msra.mxu0 %v469
        %970 = vmatprep.subr.mxu0 0.0
        %971 = vmatpush1.msra.mxu0 %v468
        %972 = vmatprep.subr.mxu0 0.0
        %973 = vmatpush1.msra.mxu0 %v467
        %974 = vmatprep.subr.mxu0 0.0
        %975 = vmatpush1.msra.mxu0 %v466
        %976 = vmatprep.subr.mxu0 0.0
        %977 = vmatpush1.msra.mxu0 %v465
        %978 = vmatprep.subr.mxu0 0.0
        %979 = vmatpush1.msra.mxu0 %v464
        %980 = vmatprep.subr.mxu0 0.0
        %981 = vmatpush2.msra.mxu0 %v495
        %982 = vmatprep.subr.mxu0 0.0
        %983 = vmatpush2.msra.mxu0 %v494
        %984 = vmatprep.subr.mxu0 0.0
        %985 = vmatpush2.msra.mxu0 %v493
        %986 = vmatprep.subr.mxu0 0.0
        %987 = vmatpush2.msra.mxu0 %v492
        %988 = vmatprep.subr.mxu0 0.0
        %989 = vmatpush2.msra.mxu0 %v491
        %990 = vmatprep.subr.mxu0 0.0
        %991 = vmatpush2.msra.mxu0 %v490
        %992 = vmatprep.subr.mxu0 0.0
        %993 = vmatpush2.msra.mxu0 %v489
        %994 = vmatprep.subr.mxu0 0.0
        %995 = vmatpush2.msra.mxu0 %v488
        %996 = vmatprep.subr.mxu0 0.0
        %997 = vmatpush2.msra.mxu0 %v487
        %998 = vmatprep.subr.mxu0 0.0
        %999 = vmatpush2.msra.mxu0 %v486
        %1000 = vmatprep.subr.mxu0 0.0
        %1001 = vmatpush2.msra.mxu0 %v485
        %1002 = vmatprep.subr.mxu0 0.0
        %1003 = vmatpush2.msra.mxu0 %v484
        %1004 = vmatprep.subr.mxu0 0.0
        %1005 = vmatpush2.msra.mxu0 %v483
        %1006 = vmatprep.subr.mxu0 0.0
        %1007 = vmatpush2.msra.mxu0 %v482
        %1008 = vmatprep.subr.mxu0 0.0
        %1009 = vmatpush2.msra.mxu0 %v481
        %1010 = vmatprep.subr.mxu0 0.0
        %1011 = vmatpush2.msra.mxu0 %v480
        %1012 = vmatprep.mubr.f32.mxu0 %v269
        %1013 = vmatmul.mubr.f32.gmra.mxu0 %v268
        %v1014 = vpop.f32.mrf.mxu0
        %v1015 = vadd.f32 %v945, %v1014
        %v1016 = vpop.f32.mrf.mxu0
        %1017 = vdwg.mxu0
        %1018 = vmatprep.subr.mxu0 0.0
        %1019 = vmatpush1.msra.mxu0 %v511
        %1020 = vmatprep.subr.mxu0 0.0
        %1021 = vmatpush1.msra.mxu0 %v510
        %1022 = vmatprep.subr.mxu0 0.0
        %1023 = vmatpush1.msra.mxu0 %v509
        %1024 = vmatprep.subr.mxu0 0.0
        %1025 = vmatpush1.msra.mxu0 %v508
        %1026 = vmatprep.subr.mxu0 0.0
        %1027 = vmatpush1.msra.mxu0 %v507
        %1028 = vmatprep.subr.mxu0 0.0
        %1029 = vmatpush1.msra.mxu0 %v506
        %1030 = vmatprep.subr.mxu0 0.0
        %1031 = vmatpush1.msra.mxu0 %v505
        %1032 = vmatprep.subr.mxu0 0.0
        %1033 = vmatpush1.msra.mxu0 %v504
        %1034 = vmatprep.subr.mxu0 0.0
        %1035 = vmatpush1.msra.mxu0 %v503
        %1036 = vmatprep.subr.mxu0 0.0
        %1037 = vmatpush1.msra.mxu0 %v502
        %1038 = vmatprep.subr.mxu0 0.0
        %1039 = vmatpush1.msra.mxu0 %v501
        %1040 = vmatprep.subr.mxu0 0.0
        %1041 = vmatpush1.msra.mxu0 %v500
        %1042 = vmatprep.subr.mxu0 0.0
        %1043 = vmatpush1.msra.mxu0 %v499
        %1044 = vmatprep.subr.mxu0 0.0
        %1045 = vmatpush1.msra.mxu0 %v498
        %1046 = vmatprep.subr.mxu0 0.0
        %1047 = vmatpush1.msra.mxu0 %v497
        %1048 = vmatprep.subr.mxu0 0.0
        %1049 = vmatpush1.msra.mxu0 %v496
        %1050 = vmatprep.subr.mxu0 0.0
        %1051 = vmatpush2.msra.mxu0 %v527
        %1052 = vmatprep.subr.mxu0 0.0
        %1053 = vmatpush2.msra.mxu0 %v526
        %1054 = vmatprep.subr.mxu0 0.0
        %1055 = vmatpush2.msra.mxu0 %v525
        %1056 = vmatprep.subr.mxu0 0.0
        %1057 = vmatpush2.msra.mxu0 %v524
        %1058 = vmatprep.subr.mxu0 0.0
        %1059 = vmatpush2.msra.mxu0 %v523
        %1060 = vmatprep.subr.mxu0 0.0
        %1061 = vmatpush2.msra.mxu0 %v522
        %1062 = vmatprep.subr.mxu0 0.0
        %1063 = vmatpush2.msra.mxu0 %v521
        %1064 = vmatprep.subr.mxu0 0.0
        %1065 = vmatpush2.msra.mxu0 %v520
        %1066 = vmatprep.subr.mxu0 0.0
        %1067 = vmatpush2.msra.mxu0 %v519
        %1068 = vmatprep.subr.mxu0 0.0
        %1069 = vmatpush2.msra.mxu0 %v518
        %1070 = vmatprep.subr.mxu0 0.0
        %1071 = vmatpush2.msra.mxu0 %v517
        %1072 = vmatprep.subr.mxu0 0.0
        %1073 = vmatpush2.msra.mxu0 %v516
        %1074 = vmatprep.subr.mxu0 0.0
        %1075 = vmatpush2.msra.mxu0 %v515
        %1076 = vmatprep.subr.mxu0 0.0
        %1077 = vmatpush2.msra.mxu0 %v514
        %1078 = vmatprep.subr.mxu0 0.0
        %1079 = vmatpush2.msra.mxu0 %v513
        %1080 = vmatprep.subr.mxu0 0.0
        %1081 = vmatpush2.msra.mxu0 %v512
        %1082 = vmatprep.mubr.f32.mxu0 %v271
        %1083 = vmatmul.mubr.f32.gmra.mxu0 %v270
        %v1084 = vpop.f32.mrf.mxu0
        %v1085 = vadd.f32 %v1015, %v1084
        %v1086 = vpop.f32.mrf.mxu0
        %1087 = vdwg.mxu0
        %v1088 = vadd.f32 %v255, %v1085
        %1089 = vst [vmem:[#allocation2] sm:$0xff] %v1088
        %p1090 = scmp.eq.s32.totalorder %s26, 13
        // Predicated region
        $region49: #{tpu_custom_call.1} parent=31 // pred_check
          %p1091 = pneg %p1090
        $region50: #{tpu_custom_call.1} parent=31 // pred_check_branch
          %1093 = sbr.rel (%p1091) target = $region52
        $region51: #{tpu_custom_call.1} parent=31 // pred_region
          %v1094 = vld [vmem:[#allocation2] sm:$0xff]
          %v1095 = vld [vmem:[#allocation8] sm:$0x1]
          %v1097 = vlaneseq
          %v1098 = vshrl.u32 %v1097, 7
          %v1099 = vsub.s32 0, %v1098
          %v1100 = vrot.slane %v1095, %v1099
          %v1102 = vadd.f32 %v1094, %v1100
          %1103 = vst [vmem:[#allocation9] sm:$0xff] %v1102
        $region52: #{tpu_custom_call.1} parent=31 // pred_fallthru
          _
        // Predicated region
        $region53: #{tpu_custom_call.1} parent=31 // pred_check
          %p1104 = pneg %p126
        $region54: #{tpu_custom_call.1} parent=31 // pred_check_branch
          %1106 = sbr.rel (%p1104) target = $region56
        $region55: #{tpu_custom_call.1} parent=31 // pred_region
          %s1108 = ssub.s32 128, 128
          %1109 = vsyncadd [#allocation5], %s1108
          %s1110 = smul.addr %s25, 128
          %s1111 = scalar_lea.hbm %s3, %s1110
          %s1113 = sshll.u32 [#allocation9], 4
          %s1114 = int_to_ptr.vmem [resolvable:$true] %s1113
          %1116 = dma.vmem_to_hbm [thread:$0]  %s1114, 128, %s1111, [#allocation5]
        $region56: #{tpu_custom_call.1} parent=31 // pred_fallthru
          _
        // Predicated region
        $region57: #{tpu_custom_call.1} parent=31 // pred_check
          %p1117 = pneg %p126
        $region58: #{tpu_custom_call.1} parent=31 // pred_check_branch
          %1119 = sbr.rel (%p1117) target = $region60
        $region59: #{tpu_custom_call.1} parent=31 // pred_region
          %1120 = dma.done [#allocation5], 128
        $region60: #{tpu_custom_call.1} parent=31 // pred_fallthru
          _
      $region32: #{tpu_custom_call.1} parent=5 // pred_fallthru
        _
      %p1121 = scmp.le.s32.totalorder 2, %s16
      // Predicated region
      $region61: #{tpu_custom_call.1} parent=5 // pred_check
        %p1122 = pneg %p1121
      $region62: #{tpu_custom_call.1} parent=5 // pred_check_branch
        %1124 = sbr.rel (%p1122) target = $region64
      $region63: #{tpu_custom_call.1} parent=5 // pred_region
        %s1125 = ssub.s32 %s16, 2
      $region64: #{tpu_custom_call.1} parent=5 // pred_fallthru
        _
    $region6: #{tpu_custom_call.1} parent=1 // loop_footer
      %s20 = sadd.s32 1, %s16
    $region7: #{tpu_custom_call.1} parent=1 // loop_footer_branch
      %15 = sbr.rel target = $region3
    $region8: #{tpu_custom_call.1} parent=1 // loop_exit
      _
    %1126 = vsyncpa [#allocation4], 1
    %s1127 = scalar_lea.sflag [#allocation4], 1
    %1128 = vsyncpa %s1127, 1
    %1129 = vsyncpa [#allocation7], 1
    %s1130 = scalar_lea.sflag [#allocation7], 1
    %1131 = vsyncpa %s1130, 1
    %1132 = vsyncpa [#allocation5], 1
    %s1133 = scalar_lea.sflag [#allocation5], 1
    %1134 = vsyncpa %s1133, 1

</llo_original>
